<compile_context>
chip_gen: v7x
topology: tpu7x:2x2x1
jax: 0.10.0
libtpu: 0.0.40
codegen_flags: <defaults>
</compile_context>

<pallas_src>
import jax
import jax.numpy as jnp
from jax.experimental import pallas as pl
from jax.experimental.pallas import tpu as pltpu


def _value_net_kernel(x_ref, w1_ref, b1_ref, w2_ref, b2_ref, out_ref):
    # fc1: (Bt, S) @ (S, H) on the MXU (HIGHEST precision ~ exact f32 since
    # K is tiny), bias + ReLU on the VPU.
    h = jnp.dot(
        x_ref[...], w1_ref[...],
        preferred_element_type=jnp.float32,
        precision=jax.lax.Precision.HIGHEST,
    )
    h = jnp.maximum(h + b1_ref[...], 0.0)
    # fc2 (single output feature): VPU multiply by the (1, H) w2 row, XLU lane
    # reduction, scalar bias from SMEM. Stored as a (Bt, 1) column.
    v = jnp.sum(h * w2_ref[...], axis=-1, keepdims=True) + b2_ref[0]
    out_ref[...] = v.astype(out_ref.dtype)


def _round_up(a: int, m: int) -> int:
    return ((a + m - 1) // m) * m


def _choose_block_b(B: int, requested: int) -> int:
    """Batch tile: multiple of 8 sublanes, <= requested, and (when B allows)
    small enough that the grid has >= 2 steps for v7x megacore sharding."""
    full = _round_up(B, 8)
    bb = min(max(requested, 8), full)
    if full > 8 and bb >= full:      # would collapse to a single grid step
        bb = _round_up(pl.cdiv(B, 2), 8)
    return max(8, _round_up(bb, 8))


def value_net_forward(x, w1, b1, w2, b2, *, block_b: int = 4096):
    """Fused ValueNet forward: relu(x @ w1 + b1) @ w2 + b2.

    x:  (B, state_dim) f32
    w1: (state_dim, hidden_dim)   b1: (1, hidden_dim)
    w2: (hidden_dim, 1)           b2: (1, 1)
    returns: (B, 1) f32
    """
    B, S = x.shape
    H = w1.shape[1]

    w2_row = w2.reshape(1, H)   # lane row for the VPU multiply
    b2_s = b2.reshape(1)        # scalar, lives in SMEM

    bb = _choose_block_b(B, block_b)
    grid = (pl.cdiv(B, bb),)    # ragged last tile handled by Pallas masking

    cost = pl.CostEstimate(
        flops=2 * B * H * (S + 1),
        transcendentals=0,
        bytes_accessed=4 * (B * S + S * H + 2 * H + 1 + B),
    )

    return pl.pallas_call(
        _value_net_kernel,
        out_shape=jax.ShapeDtypeStruct((B, 1), jnp.float32),
        grid=grid,
        in_specs=[
            pl.BlockSpec((bb, S), lambda i: (i, 0)),            # x: tiled on batch
            pl.BlockSpec((S, H), lambda i: (0, 0)),             # w1: VMEM-resident
            pl.BlockSpec((1, H), lambda i: (0, 0)),             # b1: VMEM-resident
            pl.BlockSpec((1, H), lambda i: (0, 0)),             # w2 row: VMEM-resident
            pl.BlockSpec(memory_space=pltpu.MemorySpace.SMEM),  # b2 scalar in SMEM
        ],
        out_specs=pl.BlockSpec((bb, 1), lambda i: (i, 0)),
        compiler_params=pltpu.CompilerParams(
            dimension_semantics=("parallel",)),
        cost_estimate=cost,
    )(x, w1, b1, w2_row, b2_s)


def init_params(key, state_dim, hidden_dim):
    """Deterministic init mimicking PyTorch Linear default (uniform +-1/sqrt(fan_in))."""
    k1, k2, k3, k4 = jax.random.split(key, 4)
    bound1 = 1.0 / jnp.sqrt(jnp.float32(state_dim))
    bound2 = 1.0 / jnp.sqrt(jnp.float32(hidden_dim))
    w1 = jax.random.uniform(k1, (state_dim, hidden_dim), jnp.float32, -bound1, bound1)
    b1 = jax.random.uniform(k2, (1, hidden_dim), jnp.float32, -bound1, bound1)
    w2 = jax.random.uniform(k3, (hidden_dim, 1), jnp.float32, -bound2, bound2)
    b2 = jax.random.uniform(k4, (1, 1), jnp.float32, -bound2, bound2)
    return w1, b1, w2, b2


def _reference(x, w1, b1, w2, b2):
    # Plain-JAX reference at HIGHEST matmul precision (true f32 semantics,
    # matching the kernel and the PyTorch module).
    h = jnp.maximum(
        jnp.dot(x, w1, precision=jax.lax.Precision.HIGHEST) + b1, 0.0)
    return jnp.dot(h, w2, precision=jax.lax.Precision.HIGHEST) + b2


if __name__ == "__main__":
    batch = 8
    state_dim = 4
    hidden_dim = 32

    key = jax.random.PRNGKey(0)
    kx, kp = jax.random.split(key)
    x = jax.random.normal(kx, (batch, state_dim), jnp.float32)
    w1, b1, w2, b2 = init_params(kp, state_dim, hidden_dim)

    out = jax.block_until_ready(value_net_forward(x, w1, b1, w2, b2))
    ref = _reference(x, w1, b1, w2, b2)
    assert out.shape == (batch, 1)
    assert jnp.allclose(out, ref, atol=1e-5, rtol=1e-5)

    # Second check: ragged, multi-step grid (B not a multiple of the tile)
    # exercises the Pallas edge-block masking path that replaced pad/slice.
    B2 = 300
    x2 = jax.random.normal(jax.random.PRNGKey(1), (B2, state_dim), jnp.float32)
    out2 = jax.block_until_ready(
        value_net_forward(x2, w1, b1, w2, b2, block_b=128))
    ref2 = _reference(x2, w1, b1, w2, b2)
    assert out2.shape == (B2, 1)
    assert jnp.allclose(out2, ref2, atol=1e-5, rtol=1e-5)

    print("KERNEL_OK")
</pallas_src>

<mosaic_0001>
module attributes {stable_mosaic.version = 11 : i64} {
  func.func @_value_net_kernel(%arg0: i32, %arg1: memref<8x4xf32, #tpu.memory_space<vmem>>, %arg2: memref<4x32xf32, #tpu.memory_space<vmem>>, %arg3: memref<1x32xf32, #tpu.memory_space<vmem>>, %arg4: memref<1x32xf32, #tpu.memory_space<vmem>>, %arg5: memref<1xf32, #tpu.memory_space<smem>>, %arg6: memref<8x1xf32, #tpu.memory_space<vmem>>) attributes {dimension_semantics = [#tpu.dimension_semantics<parallel>], iteration_bounds = array<i64: 1>, scalar_prefetch = 0 : i64, scratch_operands = 0 : i64, tpu.core_type = #tpu.core_type<tc>, window_params = [{transform_indices = @transform_0, window_bounds = array<i64: 8, 4>}, {pipeline_mode = #tpu.pipeline_mode<synchronous>, transform_indices = @transform_1, window_bounds = array<i64: 4, 32>}, {pipeline_mode = #tpu.pipeline_mode<synchronous>, transform_indices = @transform_2, window_bounds = array<i64: 1, 32>}, {pipeline_mode = #tpu.pipeline_mode<synchronous>, transform_indices = @transform_3, window_bounds = array<i64: 1, 32>}, {transform_indices = @transform_4, window_bounds = array<i64: 1>}, {transform_indices = @transform_5, window_bounds = array<i64: 8, 1>}]} {
    %c0 = arith.constant 0 : index
    %c0_0 = arith.constant 0 : index
    %0 = vector.load %arg1[%c0, %c0_0] : memref<8x4xf32, #tpu.memory_space<vmem>>, vector<8x4xf32>
    %c0_1 = arith.constant 0 : index
    %c0_2 = arith.constant 0 : index
    %1 = vector.load %arg2[%c0_1, %c0_2] : memref<4x32xf32, #tpu.memory_space<vmem>>, vector<4x32xf32>
    %cst = arith.constant dense<0.000000e+00> : vector<8x32xf32>
    %2 = tpu.matmul %0, %1, %cst {dimension_numbers = #tpu.dot_dimension_numbers<[1], [0], [0], [1], [0, 0, 1, 1], [], []>, precision = #tpu.contract_precision<fp32>} : vector<8x4xf32>, vector<4x32xf32>, vector<8x32xf32> -> vector<8x32xf32>
    %c0_3 = arith.constant 0 : index
    %c0_4 = arith.constant 0 : index
    %3 = vector.load %arg3[%c0_3, %c0_4] : memref<1x32xf32, #tpu.memory_space<vmem>>, vector<1x32xf32>
    %4 = vector.broadcast %3 : vector<1x32xf32> to vector<8x32xf32>
    %5 = arith.addf %2, %4 : vector<8x32xf32>
    %cst_5 = arith.constant 0.000000e+00 : f32
    %6 = vector.broadcast %cst_5 : f32 to vector<8x32xf32>
    %7 = arith.maximumf %5, %6 : vector<8x32xf32>
    %c0_6 = arith.constant 0 : index
    %c0_7 = arith.constant 0 : index
    %8 = vector.load %arg4[%c0_6, %c0_7] : memref<1x32xf32, #tpu.memory_space<vmem>>, vector<1x32xf32>
    %9 = vector.broadcast %8 : vector<1x32xf32> to vector<8x32xf32>
    %10 = arith.mulf %7, %9 : vector<8x32xf32>
    %cst_8 = arith.constant dense<0.000000e+00> : vector<8xf32>
    %11 = vector.multi_reduction <add>, %10, %cst_8 [1] : vector<8x32xf32> to vector<8xf32>
    %12 = vector.shape_cast %11 : vector<8xf32> to vector<8x1xf32>
    %c0_9 = arith.constant 0 : index
    %13 = memref.load %arg5[%c0_9] : memref<1xf32, #tpu.memory_space<smem>>
    %14 = vector.broadcast %13 : f32 to vector<8x1xf32>
    %15 = arith.addf %12, %14 : vector<8x1xf32>
    %c0_10 = arith.constant 0 : index
    %c0_11 = arith.constant 0 : index
    %16 = vector.load %arg6[%c0_10, %c0_11] : memref<8x1xf32, #tpu.memory_space<vmem>>, vector<8x1xf32>
    tpu.vector_store %arg6[%c0_10, %c0_11], %15 {strides = array<i32>} : memref<8x1xf32, #tpu.memory_space<vmem>>, vector<8x1xf32>,
    return
  }
  func.func @transform_0(%arg0: i32) -> (i32, i32) {
    %c0_i32 = arith.constant 0 : i32
    %c0_i32_0 = arith.constant 0 : i32
    return %arg0, %c0_i32 : i32, i32
  }
  func.func @transform_1(%arg0: i32) -> (i32, i32) {
    %c0_i32 = arith.constant 0 : i32
    %c0_i32_0 = arith.constant 0 : i32
    %c0_i32_1 = arith.constant 0 : i32
    return %c0_i32, %c0_i32_0 : i32, i32
  }
  func.func @transform_2(%arg0: i32) -> (i32, i32) {
    %c0_i32 = arith.constant 0 : i32
    %c0_i32_0 = arith.constant 0 : i32
    %c0_i32_1 = arith.constant 0 : i32
    return %c0_i32, %c0_i32_0 : i32, i32
  }
  func.func @transform_3(%arg0: i32) -> (i32, i32) {
    %c0_i32 = arith.constant 0 : i32
    %c0_i32_0 = arith.constant 0 : i32
    %c0_i32_1 = arith.constant 0 : i32
    return %c0_i32, %c0_i32_0 : i32, i32
  }
  func.func @transform_4(%arg0: i32) -> i32 {
    %c0_i32 = arith.constant 0 : i32
    %c0_i32_0 = arith.constant 0 : i32
    return %c0_i32 : i32
  }
  func.func @transform_5(%arg0: i32) -> (i32, i32) {
    %c0_i32 = arith.constant 0 : i32
    %c0_i32_0 = arith.constant 0 : i32
    return %arg0, %c0_i32 : i32, i32
  }
}

</mosaic_0001>

<llo_original>
// kernel: tpu_custom_call.1
$region0: #{tpu_custom_call.1}
  #allocation0 [shape = 'u32[]', space=smem, size = 0x4, offset = 0x4, fixed_abs, tag = 'smem constant byte address 0x4 - core index']
  #allocation1 [shape = 'u32[144,128]{1,0:T(1,128)}', space=vmem, size = 0x12000, scoped, tag = 'internal scratch']
  #allocation2 [shape = 'f32[1]{0:T(128)S(6)}', space=smem, size = 0x200, scoped, tag = 'scoped memory for tpu_custom_call.1']
  %s0 = inlined_call_operand.vmem [shape: f32[8,4], index: 0, kind: input, shape index: {}]
  %s1 = inlined_call_operand.vmem [shape: f32[4,32], index: 1, kind: input, shape index: {}]
  %s2 = inlined_call_operand.vmem [shape: f32[1,32], index: 2, kind: input, shape index: {}]
  %s3 = inlined_call_operand.vmem [shape: f32[1,32], index: 3, kind: input, shape index: {}]
  %s4 = inlined_call_operand.<no memory space> [shape: f32[1], index: 4, kind: input, shape index: {}]
  %s5 = inlined_call_operand.vmem [shape: f32[8,1], index: 5, kind: output, shape index: {}]
  %s6 = sld [smem:[#allocation0]]
  $region30: #{tpu_custom_call.1} parent=0
    _
  %s8 = ssub.s32 1, %s6
  %s9 = scalar_select 0, %s8, %s6
  %10 = sst [smem:[#allocation2]] %s4
  // Predicated region
  $region2: #{tpu_custom_call.1} parent=0 // pred_check
    _
  $region3: #{tpu_custom_call.1} parent=0 // pred_check_branch
    %12 = sbr.rel (0) target = $region5
  $region4: #{tpu_custom_call.1} parent=0 // pred_region
    _
  $region5: #{tpu_custom_call.1} parent=0 // pred_fallthru
    _
  // Predicated region
  $region6: #{tpu_custom_call.1} parent=0 // pred_check
    _
  $region7: #{tpu_custom_call.1} parent=0 // pred_check_branch
    %14 = sbr.rel (0) target = $region9
  $region8: #{tpu_custom_call.1} parent=0 // pred_region
    _
  $region9: #{tpu_custom_call.1} parent=0 // pred_fallthru
    _
  // Predicated region
  $region10: #{tpu_custom_call.1} parent=0 // pred_check
    _
  $region11: #{tpu_custom_call.1} parent=0 // pred_check_branch
    %16 = sbr.rel (0) target = $region13
  $region12: #{tpu_custom_call.1} parent=0 // pred_region
    _
  $region13: #{tpu_custom_call.1} parent=0 // pred_fallthru
    _
  // Predicated region
  $region14: #{tpu_custom_call.1} parent=0 // pred_check
    _
  $region15: #{tpu_custom_call.1} parent=0 // pred_check_branch
    %18 = sbr.rel (0) target = $region17
  $region16: #{tpu_custom_call.1} parent=0 // pred_region
    _
  $region17: #{tpu_custom_call.1} parent=0 // pred_fallthru
    _
  // Predicated region
  $region18: #{tpu_custom_call.1} parent=0 // pred_check
    _
  $region19: #{tpu_custom_call.1} parent=0 // pred_check_branch
    %20 = sbr.rel (0) target = $region21
  $region20: #{tpu_custom_call.1} parent=0 // pred_region
    _
  $region21: #{tpu_custom_call.1} parent=0 // pred_fallthru
    _
  %v21 = vld [vmem:[%s0] sm:$0xff]
  %v22 = vld [vmem:[%s1] sm:$0xf]
  %v23 = vld [vmem:[%s2] sm:$0x1]
  %v25 = vlaneseq
  %v26 = vshrl.u32 %v25, 7
  %v27 = vsub.s32 0, %v26
  %v28 = vrot.slane %v23, %v27
  %vm30 = vcmask 31744
  %v32 = vsel %vm30, %v21, 0
  %vm34 = vcmask 1043456
  %v36 = vsel %vm34, %v22, 0
  %38 = vmatprep.subr.mxu0 0.0
  %v39 = vand.u32 %v36, 4294901760
  %40 = vmatpush1.msra.mxu0 %v39
  %41 = vmatprep.subr.mxu0 0.0
  %42 = vmatpush1.msra.mxu0 0.0
  %43 = vmatprep.subr.mxu0 0.0
  %44 = vmatpush1.msra.mxu0 0.0
  %45 = vmatprep.subr.mxu0 0.0
  %46 = vmatpush1.msra.mxu0 0.0
  %47 = vmatprep.subr.mxu0 0.0
  %48 = vmatpush1.msra.mxu0 0.0
  %49 = vmatprep.subr.mxu0 0.0
  %50 = vmatpush1.msra.mxu0 0.0
  %51 = vmatprep.subr.mxu0 0.0
  %52 = vmatpush1.msra.mxu0 0.0
  %53 = vmatprep.subr.mxu0 0.0
  %54 = vmatpush1.msra.mxu0 0.0
  %55 = vmatprep.subr.mxu0 0.0
  %56 = vmatpush1.msra.mxu0 0.0
  %57 = vmatprep.subr.mxu0 0.0
  %58 = vmatpush1.msra.mxu0 0.0
  %59 = vmatprep.subr.mxu0 0.0
  %60 = vmatpush1.msra.mxu0 0.0
  %61 = vmatprep.subr.mxu0 0.0
  %62 = vmatpush1.msra.mxu0 0.0
  %63 = vmatprep.subr.mxu0 0.0
  %64 = vmatpush1.msra.mxu0 0.0
  %65 = vmatprep.subr.mxu0 0.0
  %66 = vmatpush1.msra.mxu0 0.0
  %67 = vmatprep.subr.mxu0 0.0
  %68 = vmatpush1.msra.mxu0 0.0
  %69 = vmatprep.subr.mxu0 0.0
  %70 = vmatpush1.msra.mxu0 0.0
  %71 = vmatprep.subr.mxu0 0.0
  %72 = vmatpush1.msra.mxu0 0.0
  %73 = vmatprep.subr.mxu0 0.0
  %74 = vmatpush1.msra.mxu0 0.0
  %75 = vmatprep.subr.mxu0 0.0
  %76 = vmatpush1.msra.mxu0 0.0
  %77 = vmatprep.subr.mxu0 0.0
  %78 = vmatpush1.msra.mxu0 0.0
  %79 = vmatprep.subr.mxu0 0.0
  %80 = vmatpush1.msra.mxu0 0.0
  %81 = vmatprep.subr.mxu0 0.0
  %82 = vmatpush1.msra.mxu0 0.0
  %83 = vmatprep.subr.mxu0 0.0
  %84 = vmatpush1.msra.mxu0 0.0
  %85 = vmatprep.subr.mxu0 0.0
  %86 = vmatpush1.msra.mxu0 0.0
  %87 = vmatprep.subr.mxu0 0.0
  %88 = vmatpush1.msra.mxu0 0.0
  %89 = vmatprep.subr.mxu0 0.0
  %90 = vmatpush1.msra.mxu0 0.0
  %91 = vmatprep.subr.mxu0 0.0
  %92 = vmatpush1.msra.mxu0 0.0
  %93 = vmatprep.subr.mxu0 0.0
  %94 = vmatpush1.msra.mxu0 0.0
  %95 = vmatprep.subr.mxu0 0.0
  %96 = vmatpush1.msra.mxu0 0.0
  %97 = vmatprep.subr.mxu0 0.0
  %98 = vmatpush1.msra.mxu0 0.0
  %99 = vmatprep.subr.mxu0 0.0
  %100 = vmatpush1.msra.mxu0 0.0
  %101 = vmatprep.subr.mxu0 0.0
  %102 = vmatpush1.msra.mxu0 0.0
  %103 = vmatprep.mubr.f32.mxu0 0.0
  %v104 = vand.u32 %v32, 4294901760
  %v105 = vsub.f32 %v32, %v104
  %v106 = vand.u32 %v105, 4294901760
  %v107 = vsub.f32 %v105, %v106
  %v108 = vand.u32 %v107, 4294901760
  %109 = vmatmul.mubr.f32.gmra.mrb[0].mxu0 %v108
  %v110 = vpop.f32.mrb[0].mxu0
  %v111 = vadd.f32 %v28, %v110
  %v112 = vpop.f32.mrb[0].mxu0
  %113 = vdwg.mxu0
  %114 = vmatprep.subr.mxu0 0.0
  %v115 = vand.u32 %v36, 4294901760
  %v116 = vsub.f32 %v36, %v115
  %v117 = vand.u32 %v116, 4294901760
  %v118 = vsub.f32 %v116, %v117
  %v119 = vand.u32 %v118, 4294901760
  %120 = vmatpush1.msra.mxu0 %v119
  %121 = vmatprep.subr.mxu0 0.0
  %122 = vmatpush1.msra.mxu0 0.0
  %123 = vmatprep.subr.mxu0 0.0
  %124 = vmatpush1.msra.mxu0 0.0
  %125 = vmatprep.subr.mxu0 0.0
  %126 = vmatpush1.msra.mxu0 0.0
  %127 = vmatprep.subr.mxu0 0.0
  %128 = vmatpush1.msra.mxu0 0.0
  %129 = vmatprep.subr.mxu0 0.0
  %130 = vmatpush1.msra.mxu0 0.0
  %131 = vmatprep.subr.mxu0 0.0
  %132 = vmatpush1.msra.mxu0 0.0
  %133 = vmatprep.subr.mxu0 0.0
  %134 = vmatpush1.msra.mxu0 0.0
  %135 = vmatprep.subr.mxu0 0.0
  %136 = vmatpush1.msra.mxu0 0.0
  %137 = vmatprep.subr.mxu0 0.0
  %138 = vmatpush1.msra.mxu0 0.0
  %139 = vmatprep.subr.mxu0 0.0
  %140 = vmatpush1.msra.mxu0 0.0
  %141 = vmatprep.subr.mxu0 0.0
  %142 = vmatpush1.msra.mxu0 0.0
  %143 = vmatprep.subr.mxu0 0.0
  %144 = vmatpush1.msra.mxu0 0.0
  %145 = vmatprep.subr.mxu0 0.0
  %146 = vmatpush1.msra.mxu0 0.0
  %147 = vmatprep.subr.mxu0 0.0
  %148 = vmatpush1.msra.mxu0 0.0
  %149 = vmatprep.subr.mxu0 0.0
  %150 = vmatpush1.msra.mxu0 0.0
  %151 = vmatprep.subr.mxu0 0.0
  %152 = vmatpush1.msra.mxu0 0.0
  %153 = vmatprep.subr.mxu0 0.0
  %154 = vmatpush1.msra.mxu0 0.0
  %155 = vmatprep.subr.mxu0 0.0
  %156 = vmatpush1.msra.mxu0 0.0
  %157 = vmatprep.subr.mxu0 0.0
  %158 = vmatpush1.msra.mxu0 0.0
  %159 = vmatprep.subr.mxu0 0.0
  %160 = vmatpush1.msra.mxu0 0.0
  %161 = vmatprep.subr.mxu0 0.0
  %162 = vmatpush1.msra.mxu0 0.0
  %163 = vmatprep.subr.mxu0 0.0
  %164 = vmatpush1.msra.mxu0 0.0
  %165 = vmatprep.subr.mxu0 0.0
  %166 = vmatpush1.msra.mxu0 0.0
  %167 = vmatprep.subr.mxu0 0.0
  %168 = vmatpush1.msra.mxu0 0.0
  %169 = vmatprep.subr.mxu0 0.0
  %170 = vmatpush1.msra.mxu0 0.0
  %171 = vmatprep.subr.mxu0 0.0
  %172 = vmatpush1.msra.mxu0 0.0
  %173 = vmatprep.subr.mxu0 0.0
  %174 = vmatpush1.msra.mxu0 0.0
  %175 = vmatprep.subr.mxu0 0.0
  %176 = vmatpush1.msra.mxu0 0.0
  %177 = vmatprep.subr.mxu0 0.0
  %178 = vmatpush1.msra.mxu0 0.0
  %179 = vmatprep.subr.mxu0 0.0
  %180 = vmatpush1.msra.mxu0 0.0
  %181 = vmatprep.subr.mxu0 0.0
  %182 = vmatpush1.msra.mxu0 0.0
  %183 = vmatprep.mubr.f32.mxu0 0.0
  %v184 = vand.u32 %v32, 4294901760
  %185 = vmatmul.mubr.f32.gmra.mrb[0].mxu0 %v184
  %v186 = vpop.f32.mrb[0].mxu0
  %v187 = vadd.f32 %v111, %v186
  %v188 = vpop.f32.mrb[0].mxu0
  %189 = vdwg.mxu0
  %190 = vmatprep.subr.mxu0 0.0
  %v191 = vand.u32 %v36, 4294901760
  %v192 = vsub.f32 %v36, %v191
  %193 = vmatpush1.msra.mxu0 %v192
  %194 = vmatprep.subr.mxu0 0.0
  %195 = vmatpush1.msra.mxu0 0.0
  %196 = vmatprep.subr.mxu0 0.0
  %197 = vmatpush1.msra.mxu0 0.0
  %198 = vmatprep.subr.mxu0 0.0
  %199 = vmatpush1.msra.mxu0 0.0
  %200 = vmatprep.subr.mxu0 0.0
  %201 = vmatpush1.msra.mxu0 0.0
  %202 = vmatprep.subr.mxu0 0.0
  %203 = vmatpush1.msra.mxu0 0.0
  %204 = vmatprep.subr.mxu0 0.0
  %205 = vmatpush1.msra.mxu0 0.0
  %206 = vmatprep.subr.mxu0 0.0
  %207 = vmatpush1.msra.mxu0 0.0
  %208 = vmatprep.subr.mxu0 0.0
  %209 = vmatpush1.msra.mxu0 0.0
  %210 = vmatprep.subr.mxu0 0.0
  %211 = vmatpush1.msra.mxu0 0.0
  %212 = vmatprep.subr.mxu0 0.0
  %213 = vmatpush1.msra.mxu0 0.0
  %214 = vmatprep.subr.mxu0 0.0
  %215 = vmatpush1.msra.mxu0 0.0
  %216 = vmatprep.subr.mxu0 0.0
  %217 = vmatpush1.msra.mxu0 0.0
  %218 = vmatprep.subr.mxu0 0.0
  %219 = vmatpush1.msra.mxu0 0.0
  %220 = vmatprep.subr.mxu0 0.0
  %221 = vmatpush1.msra.mxu0 0.0
  %222 = vmatprep.subr.mxu0 0.0
  %223 = vmatpush1.msra.mxu0 0.0
  %224 = vmatprep.subr.mxu0 0.0
  %225 = vmatpush1.msra.mxu0 0.0
  %226 = vmatprep.subr.mxu0 0.0
  %227 = vmatpush1.msra.mxu0 0.0
  %228 = vmatprep.subr.mxu0 0.0
  %229 = vmatpush1.msra.mxu0 0.0
  %230 = vmatprep.subr.mxu0 0.0
  %231 = vmatpush1.msra.mxu0 0.0
  %232 = vmatprep.subr.mxu0 0.0
  %233 = vmatpush1.msra.mxu0 0.0
  %234 = vmatprep.subr.mxu0 0.0
  %235 = vmatpush1.msra.mxu0 0.0
  %236 = vmatprep.subr.mxu0 0.0
  %237 = vmatpush1.msra.mxu0 0.0
  %238 = vmatprep.subr.mxu0 0.0
  %239 = vmatpush1.msra.mxu0 0.0
  %240 = vmatprep.subr.mxu0 0.0
  %241 = vmatpush1.msra.mxu0 0.0
  %242 = vmatprep.subr.mxu0 0.0
  %243 = vmatpush1.msra.mxu0 0.0
  %244 = vmatprep.subr.mxu0 0.0
  %245 = vmatpush1.msra.mxu0 0.0
  %246 = vmatprep.subr.mxu0 0.0
  %247 = vmatpush1.msra.mxu0 0.0
  %248 = vmatprep.subr.mxu0 0.0
  %249 = vmatpush1.msra.mxu0 0.0
  %250 = vmatprep.subr.mxu0 0.0
  %251 = vmatpush1.msra.mxu0 0.0
  %252 = vmatprep.subr.mxu0 0.0
  %253 = vmatpush1.msra.mxu0 0.0
  %254 = vmatprep.subr.mxu0 0.0
  %255 = vmatpush1.msra.mxu0 0.0
  %256 = vmatprep.mubr.f32.mxu0 0.0
  %v257 = vand.u32 %v32, 4294901760
  %v258 = vsub.f32 %v32, %v257
  %259 = vmatmul.mubr.f32.gmra.mrb[0].mxu0 %v258
  %v260 = vpop.f32.mrb[0].mxu0
  %v261 = vadd.f32 %v187, %v260
  %v262 = vpop.f32.mrb[0].mxu0
  %263 = vdwg.mxu0
  %264 = vmatprep.subr.mxu0 0.0
  %v265 = vand.u32 %v36, 4294901760
  %266 = vmatpush1.msra.mxu0 %v265
  %267 = vmatprep.subr.mxu0 0.0
  %268 = vmatpush1.msra.mxu0 0.0
  %269 = vmatprep.subr.mxu0 0.0
  %270 = vmatpush1.msra.mxu0 0.0
  %271 = vmatprep.subr.mxu0 0.0
  %272 = vmatpush1.msra.mxu0 0.0
  %273 = vmatprep.subr.mxu0 0.0
  %274 = vmatpush1.msra.mxu0 0.0
  %275 = vmatprep.subr.mxu0 0.0
  %276 = vmatpush1.msra.mxu0 0.0
  %277 = vmatprep.subr.mxu0 0.0
  %278 = vmatpush1.msra.mxu0 0.0
  %279 = vmatprep.subr.mxu0 0.0
  %280 = vmatpush1.msra.mxu0 0.0
  %281 = vmatprep.subr.mxu0 0.0
  %282 = vmatpush1.msra.mxu0 0.0
  %283 = vmatprep.subr.mxu0 0.0
  %284 = vmatpush1.msra.mxu0 0.0
  %285 = vmatprep.subr.mxu0 0.0
  %286 = vmatpush1.msra.mxu0 0.0
  %287 = vmatprep.subr.mxu0 0.0
  %288 = vmatpush1.msra.mxu0 0.0
  %289 = vmatprep.subr.mxu0 0.0
  %290 = vmatpush1.msra.mxu0 0.0
  %291 = vmatprep.subr.mxu0 0.0
  %292 = vmatpush1.msra.mxu0 0.0
  %293 = vmatprep.subr.mxu0 0.0
  %294 = vmatpush1.msra.mxu0 0.0
  %295 = vmatprep.subr.mxu0 0.0
  %296 = vmatpush1.msra.mxu0 0.0
  %297 = vmatprep.subr.mxu0 0.0
  %298 = vmatpush1.msra.mxu0 0.0
  %299 = vmatprep.subr.mxu0 0.0
  %300 = vmatpush1.msra.mxu0 0.0
  %301 = vmatprep.subr.mxu0 0.0
  %302 = vmatpush1.msra.mxu0 0.0
  %303 = vmatprep.subr.mxu0 0.0
  %304 = vmatpush1.msra.mxu0 0.0
  %305 = vmatprep.subr.mxu0 0.0
  %306 = vmatpush1.msra.mxu0 0.0
  %307 = vmatprep.subr.mxu0 0.0
  %308 = vmatpush1.msra.mxu0 0.0
  %309 = vmatprep.subr.mxu0 0.0
  %310 = vmatpush1.msra.mxu0 0.0
  %311 = vmatprep.subr.mxu0 0.0
  %312 = vmatpush1.msra.mxu0 0.0
  %313 = vmatprep.subr.mxu0 0.0
  %314 = vmatpush1.msra.mxu0 0.0
  %315 = vmatprep.subr.mxu0 0.0
  %316 = vmatpush1.msra.mxu0 0.0
  %317 = vmatprep.subr.mxu0 0.0
  %318 = vmatpush1.msra.mxu0 0.0
  %319 = vmatprep.subr.mxu0 0.0
  %320 = vmatpush1.msra.mxu0 0.0
  %321 = vmatprep.subr.mxu0 0.0
  %322 = vmatpush1.msra.mxu0 0.0
  %323 = vmatprep.subr.mxu0 0.0
  %324 = vmatpush1.msra.mxu0 0.0
  %325 = vmatprep.subr.mxu0 0.0
  %326 = vmatpush1.msra.mxu0 0.0
  %327 = vmatprep.subr.mxu0 0.0
  %328 = vmatpush1.msra.mxu0 0.0
  %329 = vmatprep.mubr.f32.mxu0 0.0
  %v330 = vand.u32 %v32, 4294901760
  %v331 = vsub.f32 %v32, %v330
  %v332 = vand.u32 %v331, 4294901760
  %333 = vmatmul.mubr.f32.gmra.mrb[0].mxu0 %v332
  %v334 = vpop.f32.mrb[0].mxu0
  %v335 = vadd.f32 %v261, %v334
  %v336 = vpop.f32.mrb[0].mxu0
  %337 = vdwg.mxu0
  %338 = vmatprep.subr.mxu0 0.0
  %v339 = vand.u32 %v36, 4294901760
  %v340 = vsub.f32 %v36, %v339
  %v341 = vand.u32 %v340, 4294901760
  %342 = vmatpush1.msra.mxu0 %v341
  %343 = vmatprep.subr.mxu0 0.0
  %344 = vmatpush1.msra.mxu0 0.0
  %345 = vmatprep.subr.mxu0 0.0
  %346 = vmatpush1.msra.mxu0 0.0
  %347 = vmatprep.subr.mxu0 0.0
  %348 = vmatpush1.msra.mxu0 0.0
  %349 = vmatprep.subr.mxu0 0.0
  %350 = vmatpush1.msra.mxu0 0.0
  %351 = vmatprep.subr.mxu0 0.0
  %352 = vmatpush1.msra.mxu0 0.0
  %353 = vmatprep.subr.mxu0 0.0
  %354 = vmatpush1.msra.mxu0 0.0
  %355 = vmatprep.subr.mxu0 0.0
  %356 = vmatpush1.msra.mxu0 0.0
  %357 = vmatprep.subr.mxu0 0.0
  %358 = vmatpush1.msra.mxu0 0.0
  %359 = vmatprep.subr.mxu0 0.0
  %360 = vmatpush1.msra.mxu0 0.0
  %361 = vmatprep.subr.mxu0 0.0
  %362 = vmatpush1.msra.mxu0 0.0
  %363 = vmatprep.subr.mxu0 0.0
  %364 = vmatpush1.msra.mxu0 0.0
  %365 = vmatprep.subr.mxu0 0.0
  %366 = vmatpush1.msra.mxu0 0.0
  %367 = vmatprep.subr.mxu0 0.0
  %368 = vmatpush1.msra.mxu0 0.0
  %369 = vmatprep.subr.mxu0 0.0
  %370 = vmatpush1.msra.mxu0 0.0
  %371 = vmatprep.subr.mxu0 0.0
  %372 = vmatpush1.msra.mxu0 0.0
  %373 = vmatprep.subr.mxu0 0.0
  %374 = vmatpush1.msra.mxu0 0.0
  %375 = vmatprep.subr.mxu0 0.0
  %376 = vmatpush1.msra.mxu0 0.0
  %377 = vmatprep.subr.mxu0 0.0
  %378 = vmatpush1.msra.mxu0 0.0
  %379 = vmatprep.subr.mxu0 0.0
  %380 = vmatpush1.msra.mxu0 0.0
  %381 = vmatprep.subr.mxu0 0.0
  %382 = vmatpush1.msra.mxu0 0.0
  %383 = vmatprep.subr.mxu0 0.0
  %384 = vmatpush1.msra.mxu0 0.0
  %385 = vmatprep.subr.mxu0 0.0
  %386 = vmatpush1.msra.mxu0 0.0
  %387 = vmatprep.subr.mxu0 0.0
  %388 = vmatpush1.msra.mxu0 0.0
  %389 = vmatprep.subr.mxu0 0.0
  %390 = vmatpush1.msra.mxu0 0.0
  %391 = vmatprep.subr.mxu0 0.0
  %392 = vmatpush1.msra.mxu0 0.0
  %393 = vmatprep.subr.mxu0 0.0
  %394 = vmatpush1.msra.mxu0 0.0
  %395 = vmatprep.subr.mxu0 0.0
  %396 = vmatpush1.msra.mxu0 0.0
  %397 = vmatprep.subr.mxu0 0.0
  %398 = vmatpush1.msra.mxu0 0.0
  %399 = vmatprep.subr.mxu0 0.0
  %400 = vmatpush1.msra.mxu0 0.0
  %401 = vmatprep.subr.mxu0 0.0
  %402 = vmatpush1.msra.mxu0 0.0
  %403 = vmatprep.subr.mxu0 0.0
  %404 = vmatpush1.msra.mxu0 0.0
  %405 = vmatprep.mubr.f32.mxu0 0.0
  %v406 = vand.u32 %v32, 4294901760
  %407 = vmatmul.mubr.f32.gmra.mrb[0].mxu0 %v406
  %v408 = vpop.f32.mrb[0].mxu0
  %v409 = vadd.f32 %v335, %v408
  %v410 = vpop.f32.mrb[0].mxu0
  %411 = vdwg.mxu0
  %412 = vmatprep.subr.mxu0 0.0
  %v413 = vand.u32 %v36, 4294901760
  %414 = vmatpush1.msra.mxu0 %v413
  %415 = vmatprep.subr.mxu0 0.0
  %416 = vmatpush1.msra.mxu0 0.0
  %417 = vmatprep.subr.mxu0 0.0
  %418 = vmatpush1.msra.mxu0 0.0
  %419 = vmatprep.subr.mxu0 0.0
  %420 = vmatpush1.msra.mxu0 0.0
  %421 = vmatprep.subr.mxu0 0.0
  %422 = vmatpush1.msra.mxu0 0.0
  %423 = vmatprep.subr.mxu0 0.0
  %424 = vmatpush1.msra.mxu0 0.0
  %425 = vmatprep.subr.mxu0 0.0
  %426 = vmatpush1.msra.mxu0 0.0
  %427 = vmatprep.subr.mxu0 0.0
  %428 = vmatpush1.msra.mxu0 0.0
  %429 = vmatprep.subr.mxu0 0.0
  %430 = vmatpush1.msra.mxu0 0.0
  %431 = vmatprep.subr.mxu0 0.0
  %432 = vmatpush1.msra.mxu0 0.0
  %433 = vmatprep.subr.mxu0 0.0
  %434 = vmatpush1.msra.mxu0 0.0
  %435 = vmatprep.subr.mxu0 0.0
  %436 = vmatpush1.msra.mxu0 0.0
  %437 = vmatprep.subr.mxu0 0.0
  %438 = vmatpush1.msra.mxu0 0.0
  %439 = vmatprep.subr.mxu0 0.0
  %440 = vmatpush1.msra.mxu0 0.0
  %441 = vmatprep.subr.mxu0 0.0
  %442 = vmatpush1.msra.mxu0 0.0
  %443 = vmatprep.subr.mxu0 0.0
  %444 = vmatpush1.msra.mxu0 0.0
  %445 = vmatprep.subr.mxu0 0.0
  %446 = vmatpush1.msra.mxu0 0.0
  %447 = vmatprep.subr.mxu0 0.0
  %448 = vmatpush1.msra.mxu0 0.0
  %449 = vmatprep.subr.mxu0 0.0
  %450 = vmatpush1.msra.mxu0 0.0
  %451 = vmatprep.subr.mxu0 0.0
  %452 = vmatpush1.msra.mxu0 0.0
  %453 = vmatprep.subr.mxu0 0.0
  %454 = vmatpush1.msra.mxu0 0.0
  %455 = vmatprep.subr.mxu0 0.0
  %456 = vmatpush1.msra.mxu0 0.0
  %457 = vmatprep.subr.mxu0 0.0
  %458 = vmatpush1.msra.mxu0 0.0
  %459 = vmatprep.subr.mxu0 0.0
  %460 = vmatpush1.msra.mxu0 0.0
  %461 = vmatprep.subr.mxu0 0.0
  %462 = vmatpush1.msra.mxu0 0.0
  %463 = vmatprep.subr.mxu0 0.0
  %464 = vmatpush1.msra.mxu0 0.0
  %465 = vmatprep.subr.mxu0 0.0
  %466 = vmatpush1.msra.mxu0 0.0
  %467 = vmatprep.subr.mxu0 0.0
  %468 = vmatpush1.msra.mxu0 0.0
  %469 = vmatprep.subr.mxu0 0.0
  %470 = vmatpush1.msra.mxu0 0.0
  %471 = vmatprep.subr.mxu0 0.0
  %472 = vmatpush1.msra.mxu0 0.0
  %473 = vmatprep.subr.mxu0 0.0
  %474 = vmatpush1.msra.mxu0 0.0
  %475 = vmatprep.subr.mxu0 0.0
  %476 = vmatpush1.msra.mxu0 0.0
  %477 = vmatprep.mubr.f32.mxu0 0.0
  %v478 = vand.u32 %v32, 4294901760
  %479 = vmatmul.mubr.f32.gmra.mrb[0].mxu0 %v478
  %v480 = vpop.f32.mrb[0].mxu0
  %v481 = vadd.f32 %v409, %v480
  %v482 = vpop.f32.mrb[0].mxu0
  %483 = vdwg.mxu0
  %v484 = vmax.f32 %v481, 0.0
  %v485 = vld [vmem:[%s3] sm:$0x1]
  %v487 = vlaneseq
  %v488 = vshrl.u32 %v487, 7
  %v489 = vsub.s32 0, %v488
  %v490 = vrot.slane %v485, %v489
  %v492 = vmul.f32 %v484, %v490
  %vm493 = vcmask 261120
  %v494 = vsel %vm493, %v492, 0.0
  %495 = vadd.xlane.f32.xlu0 %v494
  %v496 = vpop.xlane.xlu0 %495
  %s497 = sld [smem:[#allocation2]]
  %v498 = vstv %s497
  %v499 = vadd.f32 %v496, %v498
  %vm500 = vcmask 7168
  %501 = vst.msk [vmem:[%s5] sm:$0xff] %vm500, %v499
  // Predicated region
  $region22: #{tpu_custom_call.1} parent=0 // pred_check
    _
  $region23: #{tpu_custom_call.1} parent=0 // pred_check_branch
    %503 = sbr.rel (0) target = $region25
  $region24: #{tpu_custom_call.1} parent=0 // pred_region
    _
  $region25: #{tpu_custom_call.1} parent=0 // pred_fallthru
    _
  // Predicated region
  $region26: #{tpu_custom_call.1} parent=0 // pred_check
    _
  $region27: #{tpu_custom_call.1} parent=0 // pred_check_branch
    %505 = sbr.rel (0) target = $region29
  $region28: #{tpu_custom_call.1} parent=0 // pred_region
    _
  $region29: #{tpu_custom_call.1} parent=0 // pred_fallthru
    _

</llo_original>
